<compile_context>
chip_gen: v7x
topology: tpu7x:2x2x1
jax: 0.10.0
libtpu: 0.0.40
codegen_flags: <defaults>
</compile_context>

<pallas_src>
import functools
import math

import jax
import jax.numpy as jnp
from jax.experimental import pallas as pl
from jax.experimental.pallas import tpu as pltpu

VMEM_LIMIT = 32 * 1024 * 1024   # explicit scoped-VMEM budget, safe on v5e/v6e/v7x


# ----------------------------------------------------------------------------- helpers
def _round_up(v, m):
    return ((v + m - 1) // m) * m


def _pad_axis(x, axis, target):
    if x.shape[axis] == target:
        return x
    widths = [(0, 0)] * x.ndim
    widths[axis] = (0, target - x.shape[axis])
    return jnp.pad(x, widths)


def _pick_m(M, cap=256):
    Mp = _round_up(M, 16)
    if Mp <= cap:
        return Mp, Mp
    for t in (cap, 128, 64, 32, 16):
        if Mp % t == 0:
            return Mp, t
    return _round_up(M, cap), cap


def _pick_n(N, cap=512):
    # all weight N dims are padded to a multiple of 128 at build time (lane-dense stores)
    if N <= cap:
        return N, N
    for t in (cap, 256, 128):
        if N % t == 0:
            return N, t
    return _round_up(N, 128), 128


def _pick_k(K, cap=1024):
    Kp = _round_up(K, 128)
    if Kp <= cap:
        return Kp, Kp
    for t in (cap, 768, 512, 384, 256, 128):
        if Kp % t == 0:
            return Kp, t
    return Kp, 128


# ------------------------------------------------- fused GEMM + bias (+residual) (+ReLU)
def _mm_kernel(*refs, relu, has_res):
    if has_res:
        a_ref, b_ref, bias_ref, res_ref, o_ref, acc_ref = refs
    else:
        a_ref, b_ref, bias_ref, o_ref, acc_ref = refs
        res_ref = None
    k = pl.program_id(2)

    @pl.when(k == 0)
    def _():
        # accumulator initialised with the folded-BN bias -> no epilogue bias add
        acc_ref[...] = jnp.broadcast_to(bias_ref[...], acc_ref.shape)

    acc_ref[...] += jnp.dot(a_ref[...], b_ref[...],
                            preferred_element_type=jnp.float32)

    @pl.when(k == pl.num_programs(2) - 1)
    def _():
        out = acc_ref[...]
        if has_res:
            out = out + res_ref[...].astype(jnp.float32)
        if relu:
            out = jnp.maximum(out, 0.0)
        o_ref[...] = out.astype(o_ref.dtype)


def matmul_bias_act(a, b, bias, residual=None, *, relu):
    """out = act(a @ b + bias [+ residual]); a:(M,K) bf16, b:(K,N) bf16, bias:(1,N) f32."""
    M, K = a.shape
    K2, N = b.shape
    assert K == K2 and bias.shape == (1, N), (a.shape, b.shape, bias.shape)
    Mp, tm = _pick_m(M)
    Np, tn = _pick_n(N)
    Kp, tk = _pick_k(K)

    a_p = _pad_axis(_pad_axis(a, 0, Mp), 1, Kp)   # no-op for every layer in this net
    b_p = _pad_axis(b, 0, Kp)                     # weights pre-padded at build time
    bias_p = _pad_axis(bias, 1, Np)               # no-op

    in_specs = [
        pl.BlockSpec((tm, tk), lambda i, j, k: (i, k)),
        pl.BlockSpec((tk, tn), lambda i, j, k: (k, j)),
        pl.BlockSpec((1, tn), lambda i, j, k: (0, j)),
    ]
    args = [a_p, b_p, bias_p]
    if residual is not None:
        assert residual.shape == (M, N)
        in_specs.append(pl.BlockSpec((tm, tn), lambda i, j, k: (i, j)))
        args.append(_pad_axis(residual, 0, Mp))

    nres = 1 if residual is not None else 0
    cost = pl.CostEstimate(
        flops=2 * Mp * Np * Kp,
        transcendentals=0,
        bytes_accessed=2 * (Mp * Kp + Kp * Np + (1 + nres) * Mp * Np) + 4 * Np)

    out = pl.pallas_call(
        functools.partial(_mm_kernel, relu=relu, has_res=residual is not None),
        out_shape=jax.ShapeDtypeStruct((Mp, Np), jnp.bfloat16),
        grid_spec=pltpu.PrefetchScalarGridSpec(
            num_scalar_prefetch=0,
            grid=(Mp // tm, Np // tn, Kp // tk),
            in_specs=in_specs,
            out_specs=pl.BlockSpec((tm, tn), lambda i, j, k: (i, j)),
            scratch_shapes=[pltpu.VMEM((tm, tn), jnp.float32)],
        ),
        compiler_params=pltpu.CompilerParams(
            dimension_semantics=("parallel", "parallel", "arbitrary"),
            vmem_limit_bytes=VMEM_LIMIT),
        cost_estimate=cost,
    )(*args)
    if Mp != M or Np != N:
        out = out[:M, :N]
    return out


# --------------------------------------------- implicit-GEMM 3x3 stride-1 conv (+ReLU)
def _conv3x3_kernel(x_ref, w_ref, b_ref, o_ref, *, wp, ho, wo, relu):
    # x_ref: (hp*wp, C) flattened zero-padded image; w_ref: (9, C, tn); b_ref: (1, tn)
    # o_ref: (ho*wo, tn) compact output
    tn = o_ref.shape[-1]
    L = ho * wp - 2                      # rows of the shifted-window GEMM
    base = wp + 1                        # flat offset of interior position (0, 0)
    acc = jnp.broadcast_to(b_ref[...], (L, tn))
    for t in range(9):
        di, dj = t // 3, t % 3
        s = (di - 1) * wp + (dj - 1)
        a = x_ref[base + s: base + s + L, :]        # shifted tap window, no reshape
        acc = acc + jnp.dot(a, w_ref[t], preferred_element_type=jnp.float32)
    if relu:
        acc = jnp.maximum(acc, 0.0)
    out = acc.astype(o_ref.dtype)
    for r in range(ho):                  # drop the 2 pad columns of each image row
        o_ref[r * wo:(r + 1) * wo, :] = out[r * wp: r * wp + wo, :]


def conv3x3_s1(x, p, *, relu):
    """3x3, stride 1, pad 1 conv + folded BN (+ReLU) via implicit GEMM (no im2col)."""
    w9, bias = p["w"], p["bias"]
    n, h, w, c = x.shape
    assert w9.shape[0] == 9 and w9.shape[1] == c, (w9.shape, x.shape)
    ncout = w9.shape[2]
    hp, wp = h + 2, w + 2
    xp = jnp.pad(x, ((0, 0), (1, 1), (1, 1), (0, 0)))
    xf = xp.reshape(n, hp * wp, c)                     # free reshape of adjacent dims
    tn = ncout if ncout <= 512 else 512
    assert ncout % tn == 0
    cost = pl.CostEstimate(
        flops=2 * n * 9 * (h * wp) * c * ncout,
        transcendentals=0,
        bytes_accessed=2 * (n * hp * wp * c + 9 * c * ncout + n * h * w * ncout)
        + 4 * ncout)
    out = pl.pallas_call(
        functools.partial(_conv3x3_kernel, wp=wp, ho=h, wo=w, relu=relu),
        out_shape=jax.ShapeDtypeStruct((n, h * w, ncout), jnp.bfloat16),
        grid=(n, ncout // tn),
        in_specs=[
            pl.BlockSpec((None, hp * wp, c), lambda b, j: (b, 0, 0)),
            pl.BlockSpec((9, c, tn), lambda b, j: (0, 0, j)),
            pl.BlockSpec((1, tn), lambda b, j: (0, j)),
        ],
        out_specs=pl.BlockSpec((None, h * w, tn), lambda b, j: (b, 0, j)),
        compiler_params=pltpu.CompilerParams(
            dimension_semantics=("parallel", "parallel"),
            vmem_limit_bytes=VMEM_LIMIT),
        cost_estimate=cost,
    )(xf, w9, bias)
    return out.reshape(n, h, w, ncout)


# -------------------------------------------------------- fused maxpool 3x3 / stride 2
def _maxpool_kernel(ee_ref, eo_ref, oe_ref, oo_ref, o_ref):
    ho, wo, _ = o_ref.shape
    m = oo_ref[...]
    m = jnp.maximum(m, ee_ref[0:ho, 0:wo, :])
    m = jnp.maximum(m, ee_ref[0:ho, 1:wo + 1, :])
    m = jnp.maximum(m, ee_ref[1:ho + 1, 0:wo, :])
    m = jnp.maximum(m, ee_ref[1:ho + 1, 1:wo + 1, :])
    m = jnp.maximum(m, eo_ref[0:ho, :, :])
    m = jnp.maximum(m, eo_ref[1:ho + 1, :, :])
    m = jnp.maximum(m, oe_ref[:, 0:wo, :])
    m = jnp.maximum(m, oe_ref[:, 1:wo + 1, :])
    o_ref[...] = m


def maxpool_3x3_s2(x):
    """PyTorch nn.MaxPool2d(kernel_size=3, stride=2, padding=1) on NHWC (C lane-dense)."""
    n, h, w, c = x.shape
    xp = jnp.pad(x, ((0, 0), (1, 1), (1, 1), (0, 0)), constant_values=-jnp.inf)
    ho = (h + 2 - 3) // 2 + 1
    wo = (w + 2 - 3) // 2 + 1
    # stride-2 phase views (even/odd row x even/odd col) -> kernel only needs unit strides
    ee = xp[:, 0::2, 0::2, :][:, :ho + 1, :wo + 1, :]
    eo = xp[:, 0::2, 1::2, :][:, :ho + 1, :wo, :]
    oe = xp[:, 1::2, 0::2, :][:, :ho, :wo + 1, :]
    oo = xp[:, 1::2, 1::2, :][:, :ho, :wo, :]
    return pl.pallas_call(
        _maxpool_kernel,
        out_shape=jax.ShapeDtypeStruct((n, ho, wo, c), x.dtype),
        grid=(n,),
        in_specs=[
            pl.BlockSpec((None, ho + 1, wo + 1, c), lambda i: (i, 0, 0, 0)),
            pl.BlockSpec((None, ho + 1, wo, c), lambda i: (i, 0, 0, 0)),
            pl.BlockSpec((None, ho, wo + 1, c), lambda i: (i, 0, 0, 0)),
            pl.BlockSpec((None, ho, wo, c), lambda i: (i, 0, 0, 0)),
        ],
        out_specs=pl.BlockSpec((None, ho, wo, c), lambda i: (i, 0, 0, 0)),
        compiler_params=pltpu.CompilerParams(dimension_semantics=("parallel",)),
    )(ee, eo, oe, oo)


# ----------------------------------------------------------------------- conv dispatch
def _im2col(x, k, stride, pad, k_target):
    n, h, w, c = x.shape
    xp = jnp.pad(x, ((0, 0), (pad, pad), (pad, pad), (0, 0)))
    hp, wp = h + 2 * pad, w + 2 * pad
    ho = (hp - k) // stride + 1
    wo = (wp - k) // stride + 1
    cols = []
    for i in range(k):
        for j in range(k):
            cols.append(xp[:, i:i + stride * ho:stride, j:j + stride * wo:stride, :])
    if k_target > k * k * c:                       # fold the K padding into the concat
        cols.append(jnp.zeros((n, ho, wo, k_target - k * k * c), x.dtype))
    patches = jnp.concatenate(cols, axis=-1)
    return patches.reshape(n * ho * wo, k_target), (n, ho, wo)


def conv_bn(x, p, *, relu, residual=None):
    """Conv + folded eval-mode BN (+residual add) (+ReLU) on NHWC bf16 activations."""
    if p["kind"] == "implicit":
        assert residual is None
        return conv3x3_s1(x, p, relu=relu)
    w_mat, bias, k, stride, pad = p["w"], p["bias"], p["k"], p["stride"], p["pad"]
    if k == 1:
        if stride > 1:
            # TODO(synk): fold the decimation into the GEMM A BlockSpec instead.
            x = x[:, ::stride, ::stride, :]
        n, ho, wo, c = x.shape
        cols = x.reshape(n * ho * wo, c)           # 1x1 conv = pure GEMM, no im2col
    else:
        # TODO(synk): stem 7x7 and stride-2 3x3 convs still stage bf16 im2col patches.
        cols, (n, ho, wo) = _im2col(x, k, stride, pad, w_mat.shape[0])
    res2d = residual.reshape(n * ho * wo, -1) if residual is not None else None
    out = matmul_bias_act(cols, w_mat, bias, res2d, relu=relu)
    return out.reshape(n, ho, wo, -1)


# -------------------------------------------------------------------- parameter builder
def _carry(c):
    return _round_up(c, 128)


def _fold_bn(key, cin, cout, k, eps=1e-5):
    kw, kg, kb, km, kv = jax.random.split(key, 5)
    fan_in = cin * k * k
    w = jax.random.normal(kw, (cout, cin, k, k), jnp.float32) * math.sqrt(2.0 / fan_in)
    gamma = 1.0 + 0.1 * jax.random.normal(kg, (cout,), jnp.float32)
    beta = 0.1 * jax.random.normal(kb, (cout,), jnp.float32)
    mean = 0.1 * jax.random.normal(km, (cout,), jnp.float32)
    var = 1.0 + 0.1 * jax.random.uniform(kv, (cout,), jnp.float32)
    scale = gamma / jnp.sqrt(var + eps)
    w_f = w * scale[:, None, None, None]
    bias = beta - mean * scale
    return w_f, bias


def _embed_carried(w_f, bias, cin, cout, cin_carry, cout_carry, k):
    # (cout, cin, k, k) -> (k, k, cin_carry, cout_carry); pad channels are zero
    # (and pad biases are zero) so ReLU keeps the carried lanes exactly 0 downstream.
    w_t = jnp.transpose(w_f, (2, 3, 1, 0))
    w_full = jnp.zeros((k, k, cin_carry, cout_carry), jnp.float32)
    w_full = w_full.at[:, :, :cin, :cout].set(w_t)
    b_full = jnp.zeros((cout_carry,), jnp.float32).at[:cout].set(bias)
    return w_full, b_full


def _make_conv_gemm(key, cin, cout, k, stride, pad, cin_carry, cout_carry):
    w_f, bias = _fold_bn(key, cin, cout, k)
    w_full, b_full = _embed_carried(w_f, bias, cin, cout, cin_carry, cout_carry, k)
    K = k * k * cin_carry
    Kp = _round_up(K, 128)
    w_mat = w_full.reshape(K, cout_carry)
    if Kp != K:
        w_mat = jnp.pad(w_mat, ((0, Kp - K), (0, 0)))     # build-time K pad (stem only)
    return {"kind": "gemm", "w": w_mat.astype(jnp.bfloat16),
            "bias": b_full.reshape(1, cout_carry), "k": k, "stride": stride, "pad": pad}


def _make_conv_implicit3x3(key, cin, cout, cin_carry, cout_carry):
    w_f, bias = _fold_bn(key, cin, cout, 3)
    w_full, b_full = _embed_carried(w_f, bias, cin, cout, cin_carry, cout_carry, 3)
    return {"kind": "implicit",
            "w": w_full.reshape(9, cin_carry, cout_carry).astype(jnp.bfloat16),
            "bias": b_full.reshape(1, cout_carry)}


def build_cam_params(key, num_classes):
    keys = iter(jax.random.split(key, 128))
    params = {}
    # stem: conv1 7x7/2 + bn1; carry its 64 output channels as 128 (lane-dense maxpool,
    # layer1 K already rounded to 128 downstream)
    params["conv1"] = _make_conv_gemm(next(keys), 3, 64, 7, 2, 3,
                                      cin_carry=3, cout_carry=_carry(64))
    # resnet50 with strides=(2, 2, 2, 1): layer strides (1, 2, 2, 1)
    cfg = [(64, 3, 1), (128, 4, 2), (256, 6, 2), (512, 3, 1)]
    inplanes, in_carry = 64, _carry(64)
    layers = []
    for planes, nblocks, stride in cfg:
        pc = _carry(planes)
        blocks = []
        for b in range(nblocks):
            s = stride if b == 0 else 1
            block = {"conv1": _make_conv_gemm(next(keys), inplanes, planes, 1, 1, 0,
                                              in_carry, pc)}
            if s == 1:
                block["conv2"] = _make_conv_implicit3x3(next(keys), planes, planes, pc, pc)
            else:
                block["conv2"] = _make_conv_gemm(next(keys), planes, planes, 3, s, 1, pc, pc)
            block["conv3"] = _make_conv_gemm(next(keys), planes, planes * 4, 1, 1, 0,
                                             pc, _carry(planes * 4))
            if s != 1 or inplanes != planes * 4:
                block["down"] = _make_conv_gemm(next(keys), inplanes, planes * 4, 1, s, 0,
                                                in_carry, _carry(planes * 4))
            blocks.append(block)
            inplanes, in_carry = planes * 4, _carry(planes * 4)
        layers.append(blocks)
    params["layers"] = layers
    # classifier: nn.Conv2d(2048, num_classes, 1, bias=False); lane-dense (pad to 128)
    ncls_carry = _carry(num_classes)
    wc = jax.random.normal(next(keys), (num_classes, 2048, 1, 1), jnp.float32) \
        * math.sqrt(2.0 / 2048)
    wc_full = jnp.zeros((2048, ncls_carry), jnp.float32).at[:, :num_classes].set(
        jnp.transpose(wc, (2, 3, 1, 0)).reshape(2048, num_classes))
    params["classifier"] = {"w": wc_full.astype(jnp.bfloat16),
                            "bias": jnp.zeros((1, ncls_carry), jnp.float32),
                            "num_classes": num_classes}
    return params


# ------------------------------------------------------------------------------ forward
def cam_forward(params, x_nchw):
    """CAM.forward: stage1..stage4 -> F.conv2d(x, classifier.weight) -> relu."""
    # bf16 cast before the transpose halves the layout-glue bytes
    x = jnp.transpose(x_nchw.astype(jnp.bfloat16), (0, 2, 3, 1))   # NCHW -> NHWC bf16
    # stage1: conv1, bn1, relu, maxpool, layer1
    x = conv_bn(x, params["conv1"], relu=True)
    x = maxpool_3x3_s2(x)
    # layer1 .. layer4 (bottleneck blocks)
    for blocks in params["layers"]:
        for block in blocks:
            identity = x
            out = conv_bn(x, block["conv1"], relu=True)
            out = conv_bn(out, block["conv2"], relu=True)
            if "down" in block:
                identity = conv_bn(x, block["down"], relu=False)
            # conv3 + BN + residual add + ReLU fused into one GEMM epilogue
            x = conv_bn(out, block["conv3"], relu=True, residual=identity)
    # CAM head: 1x1 conv with classifier weight (no bias) + ReLU, fused in the GEMM
    n, h, w, c = x.shape
    cls = params["classifier"]
    cam = matmul_bias_act(x.reshape(n * h * w, c), cls["w"], cls["bias"], relu=True)
    cam = cam.reshape(n, h, w, -1)[:, :, :, :cls["num_classes"]]
    # back to NCHW: (N, num_classes, H', W'), f32 at the module boundary
    return jnp.transpose(cam, (0, 3, 1, 2)).astype(jnp.float32)


# --------------------------------------------------------------------------------- main
if __name__ == "__main__":
    key = jax.random.PRNGKey(0)
    pkey, xkey = jax.random.split(key)
    num_classes = 10
    params = build_cam_params(pkey, num_classes)
    # PyTorch conv input layout is NCHW; small example input.
    x = jax.random.normal(xkey, (2, 3, 64, 64), jnp.float32)
    out = cam_forward(params, x)
    out = jax.block_until_ready(out)
    # 64 -> /2 (conv1) -> /2 (maxpool) -> /2 (layer2) -> /2 (layer3) -> 4 (layer4 stride 1)
    assert out.shape == (2, num_classes, 4, 4), out.shape
    assert bool(jnp.all(out >= 0.0))   # ReLU output
    print("KERNEL_OK")
</pallas_src>

<mosaic_0001>
module attributes {stable_mosaic.version = 11 : i64} {
  func.func @_mm_kernel(%arg0: i32, %arg1: i32, %arg2: i32, %arg3: memref<256x256xbf16, #tpu.memory_space<vmem>>, %arg4: memref<256x128xbf16, #tpu.memory_space<vmem>>, %arg5: memref<1x128xf32, #tpu.memory_space<vmem>>, %arg6: memref<256x128xbf16, #tpu.memory_space<vmem>>, %arg7: memref<256x128xf32, #tpu.memory_space<vmem>>) attributes {dimension_semantics = [#tpu.dimension_semantics<parallel>, #tpu.dimension_semantics<parallel>, #tpu.dimension_semantics<arbitrary>], iteration_bounds = array<i64: 8, 1, 1>, scalar_prefetch = 0 : i64, scratch_operands = 1 : i64, tpu.core_type = #tpu.core_type<tc>, window_params = [{transform_indices = @transform_0, window_bounds = array<i64: 256, 256>}, {transform_indices = @transform_1, window_bounds = array<i64: 256, 128>}, {transform_indices = @transform_2, window_bounds = array<i64: 1, 128>}, {transform_indices = @transform_3, window_bounds = array<i64: 256, 128>}]} {
    %c0_i32 = arith.constant 0 : i32
    %0 = arith.cmpi eq, %arg2, %c0_i32 : i32
    %1 = arith.extui %0 : i1 to i32
    %c0_i32_0 = arith.constant 0 : i32
    %2 = arith.cmpi ne, %1, %c0_i32_0 : i32
    scf.if %2 {
      %c0_10 = arith.constant 0 : index
      %c0_11 = arith.constant 0 : index
      %12 = vector.load %arg5[%c0_10, %c0_11] : memref<1x128xf32, #tpu.memory_space<vmem>>, vector<1x128xf32>
      %13 = vector.shape_cast %12 : vector<1x128xf32> to vector<1x128xf32>
      %14 = vector.broadcast %13 : vector<1x128xf32> to vector<256x128xf32>
      %c0_12 = arith.constant 0 : index
      %c0_13 = arith.constant 0 : index
      %15 = vector.load %arg7[%c0_12, %c0_13] : memref<256x128xf32, #tpu.memory_space<vmem>>, vector<256x128xf32>
      tpu.vector_store %arg7[%c0_12, %c0_13], %14 {strides = array<i32>} : memref<256x128xf32, #tpu.memory_space<vmem>>, vector<256x128xf32>,
    } else {
    }
    %c0 = arith.constant 0 : index
    %c0_1 = arith.constant 0 : index
    %3 = vector.load %arg7[%c0, %c0_1] : memref<256x128xf32, #tpu.memory_space<vmem>>, vector<256x128xf32>
    %c0_2 = arith.constant 0 : index
    %c0_3 = arith.constant 0 : index
    %4 = vector.load %arg3[%c0_2, %c0_3] : memref<256x256xbf16, #tpu.memory_space<vmem>>, vector<256x256xbf16>
    %c0_4 = arith.constant 0 : index
    %c0_5 = arith.constant 0 : index
    %5 = vector.load %arg4[%c0_4, %c0_5] : memref<256x128xbf16, #tpu.memory_space<vmem>>, vector<256x128xbf16>
    %cst = arith.constant dense<0.000000e+00> : vector<256x128xf32>
    %6 = tpu.matmul %4, %5, %cst {dimension_numbers = #tpu.dot_dimension_numbers<[1], [0], [0], [1], [0, 0, 1, 1], [], []>} : vector<256x256xbf16>, vector<256x128xbf16>, vector<256x128xf32> -> vector<256x128xf32>
    %7 = arith.addf %3, %6 : vector<256x128xf32>
    %c0_6 = arith.constant 0 : index
    %c0_7 = arith.constant 0 : index
    %8 = vector.load %arg7[%c0_6, %c0_7] : memref<256x128xf32, #tpu.memory_space<vmem>>, vector<256x128xf32>
    tpu.vector_store %arg7[%c0_6, %c0_7], %7 {strides = array<i32>} : memref<256x128xf32, #tpu.memory_space<vmem>>, vector<256x128xf32>,
    %c0_i32_8 = arith.constant 0 : i32
    %9 = arith.cmpi eq, %arg2, %c0_i32_8 : i32
    %10 = arith.extui %9 : i1 to i32
    %c0_i32_9 = arith.constant 0 : i32
    %11 = arith.cmpi ne, %10, %c0_i32_9 : i32
    scf.if %11 {
      %c0_10 = arith.constant 0 : index
      %c0_11 = arith.constant 0 : index
      %12 = vector.load %arg7[%c0_10, %c0_11] : memref<256x128xf32, #tpu.memory_space<vmem>>, vector<256x128xf32>
      %cst_12 = arith.constant 0.000000e+00 : f32
      %13 = vector.broadcast %cst_12 : f32 to vector<256x128xf32>
      %14 = arith.maximumf %12, %13 : vector<256x128xf32>
      %15 = arith.truncf %14 : vector<256x128xf32> to vector<256x128xbf16>
      %c0_13 = arith.constant 0 : index
      %c0_14 = arith.constant 0 : index
      %16 = vector.load %arg6[%c0_13, %c0_14] : memref<256x128xbf16, #tpu.memory_space<vmem>>, vector<256x128xbf16>
      tpu.vector_store %arg6[%c0_13, %c0_14], %15 {strides = array<i32>} : memref<256x128xbf16, #tpu.memory_space<vmem>>, vector<256x128xbf16>,
    } else {
    }
    return
  }
  func.func @transform_0(%arg0: i32, %arg1: i32, %arg2: i32) -> (i32, i32) {
    %c0_i32 = arith.constant 0 : i32
    return %arg0, %arg2 : i32, i32
  }
  func.func @transform_1(%arg0: i32, %arg1: i32, %arg2: i32) -> (i32, i32) {
    %c0_i32 = arith.constant 0 : i32
    return %arg2, %arg1 : i32, i32
  }
  func.func @transform_2(%arg0: i32, %arg1: i32, %arg2: i32) -> (i32, i32) {
    %c0_i32 = arith.constant 0 : i32
    %c0_i32_0 = arith.constant 0 : i32
    return %c0_i32, %arg1 : i32, i32
  }
  func.func @transform_3(%arg0: i32, %arg1: i32, %arg2: i32) -> (i32, i32) {
    %c0_i32 = arith.constant 0 : i32
    return %arg0, %arg1 : i32, i32
  }
}

</mosaic_0001>

<llo_original>
// kernel: tpu_custom_call.1
$region0: #{tpu_custom_call.1}
  #allocation0 [shape = 'u32[]', space=smem, size = 0x4, offset = 0x4, fixed_abs, tag = 'smem constant byte address 0x4 - core index']
  #allocation1 [shape = 'u32[144,128]{1,0:T(1,128)}', space=vmem, size = 0x12000, scoped, tag = 'internal scratch']
  #allocation2 [shape = 'f32[256,128]{1,0:T(8,128)}', space=vmem, size = 0x20000, scoped, tag = 'scratch operand']
  %s0 = inlined_call_operand.hbm [shape: bf16[2048,256], index: 0, kind: input, shape index: {}]
  %s1 = inlined_call_operand.hbm [shape: bf16[256,128], index: 1, kind: input, shape index: {}]
  %s2 = inlined_call_operand.vmem [shape: f32[1,128], index: 2, kind: input, shape index: {}]
  %s3 = inlined_call_operand.hbm [shape: bf16[2048,128], index: 3, kind: output, shape index: {}]
  %s4 = sld [smem:[#allocation0]]
  $region61: #{tpu_custom_call.1} parent=0
    _
  %s6 = ssub.s32 1, %s4
  %s7 = scalar_select 0, %s6, %s4
  $region1: #{tpu_custom_call.1} parent=0
    #allocation3 [shape = 'u8[262144]{0}', space=vmem, size = 0x40000, scoped, tag = 'input window, operand 0']
    #allocation4 [shape = 's32[2]{0}', space=sflag, size = 0x8, scoped, tag = 'scoped memory for tpu_custom_call.1']
    #allocation5 [shape = 's32[2]{0}', space=sflag, size = 0x8, scoped, tag = 'scoped memory for tpu_custom_call.1']
    #allocation6 [shape = 'u8[65536]{0}', space=vmem, size = 0x10000, scoped, tag = 'input window, operand 1, single buffered']
    #allocation7 [shape = 's32[1]{0}', space=sflag, size = 0x4, scoped, tag = 'scoped memory for tpu_custom_call.1']
    #allocation8 [shape = 'u8[131072]{0}', space=vmem, size = 0x20000, scoped, tag = 'output window, operand 0']
    %8 = vsyncpa [#allocation4], 0
    %s9 = scalar_lea.sflag [#allocation4], 1
    %10 = vsyncpa %s9, 0
    %11 = vsyncpa [#allocation7], 0
    %12 = vsyncpa [#allocation5], 0
    %s13 = scalar_lea.sflag [#allocation5], 1
    %14 = vsyncpa %s13, 0
    loop: start=0, step=1, limit=10
    $region2: #{tpu_custom_call.1} parent=1 // loop_pre_header
      _
    $region3: #{tpu_custom_call.1} parent=1 // loop_header
      %s16 = sphi 0, %s20
      %p17 = scmp.ge.s32.totalorder %s16, 10
      %s23 = sphi 0, %s42
      %s24 = sphi 0, %s38
      %s25 = sphi 0, %s34
      %s26 = sphi 0, %s23
      %s27 = sphi 0, %s24
      %s28 = sphi 0, %s25
      %s29 = sphi 0, %s26
      %s30 = sphi 0, %s27
      %s31 = sphi 0, %s28
      %s47 = sphi 0, %s49
      %s50 = sphi 0, %s47
      %s51 = sphi 0, %s50
      %s67 = sphi 0, %s51
      %s75 = sphi 0, %s77
      %s78 = sphi 0, %s75
      %s79 = sphi 0, %s78
      %s95 = sphi 0, %s79
      %s101 = sphi 0, %s103
      %s104 = sphi 0, %s101
      %s105 = sphi 0, %s104
      %s121 = sphi 0, %s105
      %s129 = sphi 0, %s131
      %s132 = sphi 0, %s129
      %s133 = sphi 0, %s132
      %s149 = sphi 0, %s133
    $region4: #{tpu_custom_call.1} parent=1 // loop_header_branch
      %19 = sbr.rel (%p17) target = $region8
    $region5: #{tpu_custom_call.1} parent=1 // loop_body
      %s21 = ssub.s32 %s16, 1
      %s22 = ssub.s32 %s16, 2
      %s32 = sadd.s32 1, %s25
      %p33 = scmp.ge.s32.totalorder %s32, 1
      %s34 = scalar_select %p33, 0, %s32
      %s35 = sadd.s32 1, %s24
      %s36 = scalar_select %p33, %s35, %s24
      %p37 = scmp.ge.s32.totalorder %s36, 1
      %s38 = scalar_select %p37, 0, %s36
      %s39 = sadd.s32 1, %s23
      %s40 = scalar_select %p37, %s39, %s23
      %p41 = scmp.ge.s32.totalorder %s40, 8
      %s42 = scalar_select %p41, 0, %s40
      %s43 = ssub.s32 %s23, %s42
      %s44 = ssub.s32 %s25, %s34
      %s45 = sor.u32 %s43, %s44
      %p46 = scmp.eq.s32.totalorder %s45, 0
      %s48 = sadd.s32 %s47, 1
      %s49 = scalar_select %p46, %s47, %s48
      %p52 = pneg %p46
      %p53 = scmp.eq.s32.totalorder %s16, 7
      %p54 = por %p52, %p53
      %p55 = scmp.ne.s32.totalorder %s47, %s50
      %p56 = scmp.eq.s32.totalorder %s16, 0
      %p57 = por %p55, %p56
      %p58 = scmp.ne.s32.totalorder %s47, %s50
      %p59 = scmp.eq.s32.totalorder %s21, 7
      %p60 = por %p58, %p59
      %p61 = scmp.ne.s32.totalorder %s50, %s51
      %p62 = scmp.eq.s32.totalorder %s21, 0
      %p63 = por %p61, %p62
      %p64 = scmp.ne.s32.totalorder %s50, %s51
      %p65 = scmp.eq.s32.totalorder %s22, 7
      %p66 = por %p64, %p65
      %p68 = scmp.ne.s32.totalorder %s51, %s67
      %p69 = scmp.eq.s32.totalorder %s22, 0
      %p70 = por %p68, %p69
      %s71 = ssub.s32 %s25, %s34
      %s72 = ssub.s32 %s24, %s38
      %s73 = sor.u32 %s71, %s72
      %p74 = scmp.eq.s32.totalorder %s73, 0
      %s76 = sadd.s32 %s75, 1
      %s77 = scalar_select %p74, %s75, %s76
      %p80 = pneg %p74
      %p81 = scmp.eq.s32.totalorder %s16, 7
      %p82 = por %p80, %p81
      %p83 = scmp.ne.s32.totalorder %s75, %s78
      %p84 = scmp.eq.s32.totalorder %s16, 0
      %p85 = por %p83, %p84
      %p86 = scmp.ne.s32.totalorder %s75, %s78
      %p87 = scmp.eq.s32.totalorder %s21, 7
      %p88 = por %p86, %p87
      %p89 = scmp.ne.s32.totalorder %s78, %s79
      %p90 = scmp.eq.s32.totalorder %s21, 0
      %p91 = por %p89, %p90
      %p92 = scmp.ne.s32.totalorder %s78, %s79
      %p93 = scmp.eq.s32.totalorder %s22, 7
      %p94 = por %p92, %p93
      %p96 = scmp.ne.s32.totalorder %s79, %s95
      %p97 = scmp.eq.s32.totalorder %s22, 0
      %p98 = por %p96, %p97
      %s99 = ssub.s32 %s24, %s38
      %p100 = scmp.eq.s32.totalorder %s99, 0
      %s102 = sadd.s32 %s101, 1
      %s103 = scalar_select %p100, %s101, %s102
      %p106 = pneg %p100
      %p107 = scmp.eq.s32.totalorder %s16, 7
      %p108 = por %p106, %p107
      %p109 = scmp.ne.s32.totalorder %s101, %s104
      %p110 = scmp.eq.s32.totalorder %s16, 0
      %p111 = por %p109, %p110
      %p112 = scmp.ne.s32.totalorder %s101, %s104
      %p113 = scmp.eq.s32.totalorder %s21, 7
      %p114 = por %p112, %p113
      %p115 = scmp.ne.s32.totalorder %s104, %s105
      %p116 = scmp.eq.s32.totalorder %s21, 0
      %p117 = por %p115, %p116
      %p118 = scmp.ne.s32.totalorder %s104, %s105
      %p119 = scmp.eq.s32.totalorder %s22, 7
      %p120 = por %p118, %p119
      %p122 = scmp.ne.s32.totalorder %s105, %s121
      %p123 = scmp.eq.s32.totalorder %s22, 0
      %p124 = por %p122, %p123
      %s125 = ssub.s32 %s23, %s42
      %s126 = ssub.s32 %s24, %s38
      %s127 = sor.u32 %s125, %s126
      %p128 = scmp.eq.s32.totalorder %s127, 0
      %s130 = sadd.s32 %s129, 1
      %s131 = scalar_select %p128, %s129, %s130
      %p134 = pneg %p128
      %p135 = scmp.eq.s32.totalorder %s16, 7
      %p136 = por %p134, %p135
      %p137 = scmp.ne.s32.totalorder %s129, %s132
      %p138 = scmp.eq.s32.totalorder %s16, 0
      %p139 = por %p137, %p138
      %p140 = scmp.ne.s32.totalorder %s129, %s132
      %p141 = scmp.eq.s32.totalorder %s21, 7
      %p142 = por %p140, %p141
      %p143 = scmp.ne.s32.totalorder %s132, %s133
      %p144 = scmp.eq.s32.totalorder %s21, 0
      %p145 = por %p143, %p144
      %p146 = scmp.ne.s32.totalorder %s132, %s133
      %p147 = scmp.eq.s32.totalorder %s22, 7
      %p148 = por %p146, %p147
      %p150 = scmp.ne.s32.totalorder %s133, %s149
      %p151 = scmp.eq.s32.totalorder %s22, 0
      %p152 = por %p150, %p151
      %p153 = scmp.le.s32.totalorder 1, %s16
      %p154 = scmp.lt.s32.totalorder %s16, 9
      %p155 = pnand %p153, %p154
      %p156 = pneg %p155
      // Predicated region
      $region9: #{tpu_custom_call.1} parent=5 // pred_check
        _
      $region10: #{tpu_custom_call.1} parent=5 // pred_check_branch
        %158 = sbr.rel (%p155) target = $region12
      $region11: #{tpu_custom_call.1} parent=5 // pred_region
        %s159 = ssub.s32 %s16, 1
        // Predicated region
        $region13: #{tpu_custom_call.1} parent=11 // pred_check
          %p160 = pneg %p91
        $region14: #{tpu_custom_call.1} parent=11 // pred_check_branch
          %162 = sbr.rel (%p160) target = $region16
        $region15: #{tpu_custom_call.1} parent=11 // pred_region
          %s163 = smul.u32 32, %s28
          %s165 = ssub.s32 2048, 2048
          %166 = vsyncadd [#allocation7], %s165
          %s167 = sadd.s32 %s27, %s163
          %s168 = smul.addr %s167, 64
          %s169 = scalar_lea.hbm %s1, %s168
          %s170 = sshll.u32 [#allocation6], 4
          %s171 = int_to_ptr.vmem [resolvable:$true] %s170
          %176 = dma.hbm_to_vmem [thread:$0]  %s169, 2048, %s171, [#allocation7], 64, 64, 4
        $region16: #{tpu_custom_call.1} parent=11 // pred_fallthru
          _
        // Predicated region
        $region17: #{tpu_custom_call.1} parent=11 // pred_check
          %p177 = pneg %p117
        $region18: #{tpu_custom_call.1} parent=11 // pred_check_branch
          %179 = sbr.rel (%p177) target = $region20
        $region19: #{tpu_custom_call.1} parent=11 // pred_region
          %p180 = scmp.lt.s32.totalorder %s27, 0
          %s181 = scalar_select %p180, %s27, 0
          %s182 = scalar_lea.vmem %s2, %s181
        $region20: #{tpu_custom_call.1} parent=11 // pred_fallthru
          _
      $region12: #{tpu_custom_call.1} parent=5 // pred_fallthru
        _
      %p183 = scmp.lt.s32.totalorder %s16, 8
      // Predicated region
      $region21: #{tpu_custom_call.1} parent=5 // pred_check
        %p184 = pneg %p183
      $region22: #{tpu_custom_call.1} parent=5 // pred_check_branch
        %186 = sbr.rel (%p184) target = $region24
      $region23: #{tpu_custom_call.1} parent=5 // pred_region
        // Predicated region
        $region25: #{tpu_custom_call.1} parent=23 // pred_check
          %p187 = pneg %p57
        $region26: #{tpu_custom_call.1} parent=23 // pred_check_branch
          %189 = sbr.rel (%p187) target = $region28
        $region27: #{tpu_custom_call.1} parent=23 // pred_region
          %s190 = sand.u32 %s47, 1
          %s191 = scalar_lea.sflag [#allocation4], %s190
          %s192 = sand.u32 %s47, 1
          %s193 = smul.addr %s192, 256
          %s194 = scalar_lea.vmem [#allocation3], %s193
          %s195 = smul.u32 32, %s23
          %s196 = smul.u32 2, %s25
          %s198 = ssub.s32 4096, 4096
          %199 = vsyncadd %s191, %s198
          %s200 = smul.addr %s195, 2
          %s201 = sadd.s32 %s196, %s200
          %s202 = smul.addr %s201, 64
          %s203 = scalar_lea.hbm %s0, %s202
          %s204 = sshll.u32 %s194, 4
          %s205 = int_to_ptr.vmem [resolvable:$true] %s204
          %210 = dma.hbm_to_vmem [thread:$0]  %s203, 4096, %s205, %s191, 128, 128, 8
        $region28: #{tpu_custom_call.1} parent=23 // pred_fallthru
          _
      $region24: #{tpu_custom_call.1} parent=5 // pred_fallthru
        _
      %p211 = scmp.le.s32.totalorder 1, %s16
      %p212 = scmp.lt.s32.totalorder %s16, 9
      %p213 = pnand %p211, %p212
      %p214 = pneg %p213
      // Predicated region
      $region29: #{tpu_custom_call.1} parent=5 // pred_check
        _
      $region30: #{tpu_custom_call.1} parent=5 // pred_check_branch
        %216 = sbr.rel (%p213) target = $region32
      $region31: #{tpu_custom_call.1} parent=5 // pred_region
        %s217 = ssub.s32 %s16, 1
        %s218 = sand.u32 %s50, 1
        %s219 = scalar_lea.sflag [#allocation4], %s218
        %s220 = sand.u32 %s50, 1
        %s221 = smul.addr %s220, 256
        %s222 = scalar_lea.vmem [#allocation3], %s221
        // Predicated region
        $region33: #{tpu_custom_call.1} parent=31 // pred_check
          %p223 = pneg %p63
        $region34: #{tpu_custom_call.1} parent=31 // pred_check_branch
          %225 = sbr.rel (%p223) target = $region36
        $region35: #{tpu_custom_call.1} parent=31 // pred_region
          %226 = dma.done %s219, 4096
        $region36: #{tpu_custom_call.1} parent=31 // pred_fallthru
          _
        // Predicated region
        $region37: #{tpu_custom_call.1} parent=31 // pred_check
          %p227 = pneg %p91
        $region38: #{tpu_custom_call.1} parent=31 // pred_check_branch
          %229 = sbr.rel (%p227) target = $region40
        $region39: #{tpu_custom_call.1} parent=31 // pred_region
          %230 = dma.done [#allocation7], 2048
        $region40: #{tpu_custom_call.1} parent=31 // pred_fallthru
          _
        %s231 = sand.u32 %s50, 1
        %s232 = scalar_lea.sflag [#allocation4], %s231
        %s233 = sand.u32 %s50, 1
        %s234 = smul.addr %s233, 256
        %s235 = scalar_lea.vmem [#allocation3], %s234
        %p236 = pneg %p63
        %p237 = pneg %p60
        %p238 = pneg %p91
        %p239 = pneg %p88
        %p240 = scmp.lt.s32.totalorder %s27, 0
        %s241 = scalar_select %p240, %s27, 0
        %s242 = scalar_lea.vmem %s2, %s241
        %p243 = pneg %p117
        %p244 = pneg %p114
        %p245 = pneg %p145
        %p246 = pneg %p142
        %s247 = sand.u32 %s132, 1
        %s248 = scalar_lea.sflag [#allocation5], %s247
        %s249 = sand.u32 %s132, 1
        %s250 = smul.addr %s249, 128
        %s251 = scalar_lea.vmem [#allocation8], %s250
        %s252 = smul.u32 32, %s26
        %s253 = smul.u32 2, %s28
        %s254 = smul.u32 32, %s28
        %p255 = scmp.lt.s32.totalorder %s27, 0
        %s256 = scalar_select %p255, %s27, 0
        %s257 = scalar_lea.vmem %s2, %s256
        %s258 = smul.u32 32, %s26
        %p260 = scmp.eq.s32.totalorder %s28, 0
        // Predicated region
        $region41: #{tpu_custom_call.1} parent=31 // pred_check
          %p261 = pneg %p260
        $region42: #{tpu_custom_call.1} parent=31 // pred_check_branch
          %263 = sbr.rel (%p261) target = $region44
        $region43: #{tpu_custom_call.1} parent=31 // pred_region
          %v264 = vld [vmem:[%s257] sm:$0x1]
          %v266 = vlaneseq
          %v267 = vshrl.u32 %v266, 7
          %v268 = vsub.s32 0, %v267
          %v269 = vrot.slane %v264, %v268
          %271 = vst [vmem:[#allocation2] sm:$0xff] %v269
          %272 = vst [vmem:[#allocation2 + $0x8] sm:$0xff] %v269
          %273 = vst [vmem:[#allocation2 + $0x10] sm:$0xff] %v269
          %274 = vst [vmem:[#allocation2 + $0x18] sm:$0xff] %v269
          %275 = vst [vmem:[#allocation2 + $0x20] sm:$0xff] %v269
          %276 = vst [vmem:[#allocation2 + $0x28] sm:$0xff] %v269
          %277 = vst [vmem:[#allocation2 + $0x30] sm:$0xff] %v269
          %278 = vst [vmem:[#allocation2 + $0x38] sm:$0xff] %v269
          %279 = vst [vmem:[#allocation2 + $0x40] sm:$0xff] %v269
          %280 = vst [vmem:[#allocation2 + $0x48] sm:$0xff] %v269
          %281 = vst [vmem:[#allocation2 + $0x50] sm:$0xff] %v269
          %282 = vst [vmem:[#allocation2 + $0x58] sm:$0xff] %v269
          %283 = vst [vmem:[#allocation2 + $0x60] sm:$0xff] %v269
          %284 = vst [vmem:[#allocation2 + $0x68] sm:$0xff] %v269
          %285 = vst [vmem:[#allocation2 + $0x70] sm:$0xff] %v269
          %286 = vst [vmem:[#allocation2 + $0x78] sm:$0xff] %v269
          %287 = vst [vmem:[#allocation2 + $0x80] sm:$0xff] %v269
          %288 = vst [vmem:[#allocation2 + $0x88] sm:$0xff] %v269
          %289 = vst [vmem:[#allocation2 + $0x90] sm:$0xff] %v269
          %290 = vst [vmem:[#allocation2 + $0x98] sm:$0xff] %v269
          %291 = vst [vmem:[#allocation2 + $0xa0] sm:$0xff] %v269
          %292 = vst [vmem:[#allocation2 + $0xa8] sm:$0xff] %v269
          %293 = vst [vmem:[#allocation2 + $0xb0] sm:$0xff] %v269
          %294 = vst [vmem:[#allocation2 + $0xb8] sm:$0xff] %v269
          %295 = vst [vmem:[#allocation2 + $0xc0] sm:$0xff] %v269
          %296 = vst [vmem:[#allocation2 + $0xc8] sm:$0xff] %v269
          %297 = vst [vmem:[#allocation2 + $0xd0] sm:$0xff] %v269
          %298 = vst [vmem:[#allocation2 + $0xd8] sm:$0xff] %v269
          %299 = vst [vmem:[#allocation2 + $0xe0] sm:$0xff] %v269
          %300 = vst [vmem:[#allocation2 + $0xe8] sm:$0xff] %v269
          %301 = vst [vmem:[#allocation2 + $0xf0] sm:$0xff] %v269
          %302 = vst [vmem:[#allocation2 + $0xf8] sm:$0xff] %v269
        $region44: #{tpu_custom_call.1} parent=31 // pred_fallthru
          _
        %v303 = vld [vmem:[#allocation2] sm:$0xff]
        %v304 = vld [vmem:[#allocation2 + $0x8] sm:$0xff]
        %v305 = vld [vmem:[#allocation2 + $0x10] sm:$0xff]
        %v306 = vld [vmem:[#allocation2 + $0x18] sm:$0xff]
        %v307 = vld [vmem:[#allocation2 + $0x20] sm:$0xff]
        %v308 = vld [vmem:[#allocation2 + $0x28] sm:$0xff]
        %v309 = vld [vmem:[#allocation2 + $0x30] sm:$0xff]
        %v310 = vld [vmem:[#allocation2 + $0x38] sm:$0xff]
        %v311 = vld [vmem:[#allocation2 + $0x40] sm:$0xff]
        %v312 = vld [vmem:[#allocation2 + $0x48] sm:$0xff]
        %v313 = vld [vmem:[#allocation2 + $0x50] sm:$0xff]
        %v314 = vld [vmem:[#allocation2 + $0x58] sm:$0xff]
        %v315 = vld [vmem:[#allocation2 + $0x60] sm:$0xff]
        %v316 = vld [vmem:[#allocation2 + $0x68] sm:$0xff]
        %v317 = vld [vmem:[#allocation2 + $0x70] sm:$0xff]
        %v318 = vld [vmem:[#allocation2 + $0x78] sm:$0xff]
        %v319 = vld [vmem:[#allocation2 + $0x80] sm:$0xff]
        %v320 = vld [vmem:[#allocation2 + $0x88] sm:$0xff]
        %v321 = vld [vmem:[#allocation2 + $0x90] sm:$0xff]
        %v322 = vld [vmem:[#allocation2 + $0x98] sm:$0xff]
        %v323 = vld [vmem:[#allocation2 + $0xa0] sm:$0xff]
        %v324 = vld [vmem:[#allocation2 + $0xa8] sm:$0xff]
        %v325 = vld [vmem:[#allocation2 + $0xb0] sm:$0xff]
        %v326 = vld [vmem:[#allocation2 + $0xb8] sm:$0xff]
        %v327 = vld [vmem:[#allocation2 + $0xc0] sm:$0xff]
        %v328 = vld [vmem:[#allocation2 + $0xc8] sm:$0xff]
        %v329 = vld [vmem:[#allocation2 + $0xd0] sm:$0xff]
        %v330 = vld [vmem:[#allocation2 + $0xd8] sm:$0xff]
        %v331 = vld [vmem:[#allocation2 + $0xe0] sm:$0xff]
        %v332 = vld [vmem:[#allocation2 + $0xe8] sm:$0xff]
        %v333 = vld [vmem:[#allocation2 + $0xf0] sm:$0xff]
        %v334 = vld [vmem:[#allocation2 + $0xf8] sm:$0xff]
        %v335 = vld [vmem:[%s222] sm:$0xff]
        %v336 = vld [vmem:[%s222 + $0x8] sm:$0xff]
        %v337 = vld [vmem:[%s222 + $0x10] sm:$0xff]
        %v338 = vld [vmem:[%s222 + $0x18] sm:$0xff]
        %v339 = vld [vmem:[%s222 + $0x20] sm:$0xff]
        %v340 = vld [vmem:[%s222 + $0x28] sm:$0xff]
        %v341 = vld [vmem:[%s222 + $0x30] sm:$0xff]
        %v342 = vld [vmem:[%s222 + $0x38] sm:$0xff]
        %v343 = vld [vmem:[%s222 + $0x40] sm:$0xff]
        %v344 = vld [vmem:[%s222 + $0x48] sm:$0xff]
        %v345 = vld [vmem:[%s222 + $0x50] sm:$0xff]
        %v346 = vld [vmem:[%s222 + $0x58] sm:$0xff]
        %v347 = vld [vmem:[%s222 + $0x60] sm:$0xff]
        %v348 = vld [vmem:[%s222 + $0x68] sm:$0xff]
        %v349 = vld [vmem:[%s222 + $0x70] sm:$0xff]
        %v350 = vld [vmem:[%s222 + $0x78] sm:$0xff]
        %v351 = vld [vmem:[%s222 + $0x80] sm:$0xff]
        %v352 = vld [vmem:[%s222 + $0x88] sm:$0xff]
        %v353 = vld [vmem:[%s222 + $0x90] sm:$0xff]
        %v354 = vld [vmem:[%s222 + $0x98] sm:$0xff]
        %v355 = vld [vmem:[%s222 + $0xa0] sm:$0xff]
        %v356 = vld [vmem:[%s222 + $0xa8] sm:$0xff]
        %v357 = vld [vmem:[%s222 + $0xb0] sm:$0xff]
        %v358 = vld [vmem:[%s222 + $0xb8] sm:$0xff]
        %v359 = vld [vmem:[%s222 + $0xc0] sm:$0xff]
        %v360 = vld [vmem:[%s222 + $0xc8] sm:$0xff]
        %v361 = vld [vmem:[%s222 + $0xd0] sm:$0xff]
        %v362 = vld [vmem:[%s222 + $0xd8] sm:$0xff]
        %v363 = vld [vmem:[%s222 + $0xe0] sm:$0xff]
        %v364 = vld [vmem:[%s222 + $0xe8] sm:$0xff]
        %v365 = vld [vmem:[%s222 + $0xf0] sm:$0xff]
        %v366 = vld [vmem:[%s222 + $0xf8] sm:$0xff]
        %v367 = vld [vmem:[#allocation6] sm:$0xf]
        %v368 = vld [vmem:[#allocation6 + $0x4] sm:$0xf]
        %v369 = vld [vmem:[#allocation6 + $0x8] sm:$0xf]
        %v370 = vld [vmem:[#allocation6 + $0xc] sm:$0xf]
        %v371 = vld [vmem:[#allocation6 + $0x10] sm:$0xf]
        %v372 = vld [vmem:[#allocation6 + $0x14] sm:$0xf]
        %v373 = vld [vmem:[#allocation6 + $0x18] sm:$0xf]
        %v374 = vld [vmem:[#allocation6 + $0x1c] sm:$0xf]
        %v375 = vld [vmem:[#allocation6 + $0x20] sm:$0xf]
        %v376 = vld [vmem:[#allocation6 + $0x24] sm:$0xf]
        %v377 = vld [vmem:[#allocation6 + $0x28] sm:$0xf]
        %v378 = vld [vmem:[#allocation6 + $0x2c] sm:$0xf]
        %v379 = vld [vmem:[#allocation6 + $0x30] sm:$0xf]
        %v380 = vld [vmem:[#allocation6 + $0x34] sm:$0xf]
        %v381 = vld [vmem:[#allocation6 + $0x38] sm:$0xf]
        %v382 = vld [vmem:[#allocation6 + $0x3c] sm:$0xf]
        %v383 = vld [vmem:[#allocation6 + $0x40] sm:$0xf]
        %v384 = vld [vmem:[#allocation6 + $0x44] sm:$0xf]
        %v385 = vld [vmem:[#allocation6 + $0x48] sm:$0xf]
        %v386 = vld [vmem:[#allocation6 + $0x4c] sm:$0xf]
        %v387 = vld [vmem:[#allocation6 + $0x50] sm:$0xf]
        %v388 = vld [vmem:[#allocation6 + $0x54] sm:$0xf]
        %v389 = vld [vmem:[#allocation6 + $0x58] sm:$0xf]
        %v390 = vld [vmem:[#allocation6 + $0x5c] sm:$0xf]
        %v391 = vld [vmem:[#allocation6 + $0x60] sm:$0xf]
        %v392 = vld [vmem:[#allocation6 + $0x64] sm:$0xf]
        %v393 = vld [vmem:[#allocation6 + $0x68] sm:$0xf]
        %v394 = vld [vmem:[#allocation6 + $0x6c] sm:$0xf]
        %v395 = vld [vmem:[#allocation6 + $0x70] sm:$0xf]
        %v396 = vld [vmem:[#allocation6 + $0x74] sm:$0xf]
        %v397 = vld [vmem:[#allocation6 + $0x78] sm:$0xf]
        %v398 = vld [vmem:[#allocation6 + $0x7c] sm:$0xf]
        %v431 = vunpack.c.l.b16 %v335
        %v432 = vunpack.c.h.b16 %v335
        %v433 = vunpack.c.l.b16 %v336
        %v434 = vunpack.c.h.b16 %v336
        %v435 = vunpack.c.l.b16 %v337
        %v436 = vunpack.c.h.b16 %v337
        %v437 = vunpack.c.l.b16 %v338
        %v438 = vunpack.c.h.b16 %v338
        %v439 = vunpack.c.l.b16 %v339
        %v440 = vunpack.c.h.b16 %v339
        %v441 = vunpack.c.l.b16 %v340
        %v442 = vunpack.c.h.b16 %v340
        %v443 = vunpack.c.l.b16 %v341
        %v444 = vunpack.c.h.b16 %v341
        %v445 = vunpack.c.l.b16 %v342
        %v446 = vunpack.c.h.b16 %v342
        %v447 = vunpack.c.l.b16 %v343
        %v448 = vunpack.c.h.b16 %v343
        %v449 = vunpack.c.l.b16 %v344
        %v450 = vunpack.c.h.b16 %v344
        %v451 = vunpack.c.l.b16 %v345
        %v452 = vunpack.c.h.b16 %v345
        %v453 = vunpack.c.l.b16 %v346
        %v454 = vunpack.c.h.b16 %v346
        %v455 = vunpack.c.l.b16 %v347
        %v456 = vunpack.c.h.b16 %v347
        %v457 = vunpack.c.l.b16 %v348
        %v458 = vunpack.c.h.b16 %v348
        %v459 = vunpack.c.l.b16 %v349
        %v460 = vunpack.c.h.b16 %v349
        %v461 = vunpack.c.l.b16 %v350
        %v462 = vunpack.c.h.b16 %v350
        %v463 = vunpack.c.l.b16 %v351
        %v464 = vunpack.c.h.b16 %v351
        %v465 = vunpack.c.l.b16 %v352
        %v466 = vunpack.c.h.b16 %v352
        %v467 = vunpack.c.l.b16 %v353
        %v468 = vunpack.c.h.b16 %v353
        %v469 = vunpack.c.l.b16 %v354
        %v470 = vunpack.c.h.b16 %v354
        %v471 = vunpack.c.l.b16 %v355
        %v472 = vunpack.c.h.b16 %v355
        %v473 = vunpack.c.l.b16 %v356
        %v474 = vunpack.c.h.b16 %v356
        %v475 = vunpack.c.l.b16 %v357
        %v476 = vunpack.c.h.b16 %v357
        %v477 = vunpack.c.l.b16 %v358
        %v478 = vunpack.c.h.b16 %v358
        %v479 = vunpack.c.l.b16 %v359
        %v480 = vunpack.c.h.b16 %v359
        %v481 = vunpack.c.l.b16 %v360
        %v482 = vunpack.c.h.b16 %v360
        %v483 = vunpack.c.l.b16 %v361
        %v484 = vunpack.c.h.b16 %v361
        %v485 = vunpack.c.l.b16 %v362
        %v486 = vunpack.c.h.b16 %v362
        %v487 = vunpack.c.l.b16 %v363
        %v488 = vunpack.c.h.b16 %v363
        %v489 = vunpack.c.l.b16 %v364
        %v490 = vunpack.c.h.b16 %v364
        %v491 = vunpack.c.l.b16 %v365
        %v492 = vunpack.c.h.b16 %v365
        %v493 = vunpack.c.l.b16 %v366
        %v494 = vunpack.c.h.b16 %v366
        %v495 = vpack.c.b16 %v433, %v431
        %v496 = vpack.c.b16 %v434, %v432
        %v497 = vpack.c.b16 %v437, %v435
        %v498 = vpack.c.b16 %v438, %v436
        %v499 = vpack.c.b16 %v441, %v439
        %v500 = vpack.c.b16 %v442, %v440
        %v501 = vpack.c.b16 %v445, %v443
        %v502 = vpack.c.b16 %v446, %v444
        %v503 = vpack.c.b16 %v449, %v447
        %v504 = vpack.c.b16 %v450, %v448
        %v505 = vpack.c.b16 %v453, %v451
        %v506 = vpack.c.b16 %v454, %v452
        %v507 = vpack.c.b16 %v457, %v455
        %v508 = vpack.c.b16 %v458, %v456
        %v509 = vpack.c.b16 %v461, %v459
        %v510 = vpack.c.b16 %v462, %v460
        %v511 = vpack.c.b16 %v465, %v463
        %v512 = vpack.c.b16 %v466, %v464
        %v513 = vpack.c.b16 %v469, %v467
        %v514 = vpack.c.b16 %v470, %v468
        %v515 = vpack.c.b16 %v473, %v471
        %v516 = vpack.c.b16 %v474, %v472
        %v517 = vpack.c.b16 %v477, %v475
        %v518 = vpack.c.b16 %v478, %v476
        %v519 = vpack.c.b16 %v481, %v479
        %v520 = vpack.c.b16 %v482, %v480
        %v521 = vpack.c.b16 %v485, %v483
        %v522 = vpack.c.b16 %v486, %v484
        %v523 = vpack.c.b16 %v489, %v487
        %v524 = vpack.c.b16 %v490, %v488
        %v525 = vpack.c.b16 %v493, %v491
        %v526 = vpack.c.b16 %v494, %v492
        %v591 = vunpack.c.l.b16 %v367
        %v592 = vunpack.c.l.b16 %v368
        %v593 = vunpack.c.l.b16 %v369
        %v594 = vunpack.c.l.b16 %v370
        %v595 = vunpack.c.l.b16 %v371
        %v596 = vunpack.c.l.b16 %v372
        %v597 = vunpack.c.l.b16 %v373
        %v598 = vunpack.c.l.b16 %v374
        %v599 = vunpack.c.l.b16 %v375
        %v600 = vunpack.c.l.b16 %v376
        %v601 = vunpack.c.l.b16 %v377
        %v602 = vunpack.c.l.b16 %v378
        %v603 = vunpack.c.l.b16 %v379
        %v604 = vunpack.c.l.b16 %v380
        %v605 = vunpack.c.l.b16 %v381
        %v606 = vunpack.c.l.b16 %v382
        %v607 = vunpack.c.l.b16 %v383
        %v608 = vunpack.c.l.b16 %v384
        %v609 = vunpack.c.l.b16 %v385
        %v610 = vunpack.c.l.b16 %v386
        %v611 = vunpack.c.l.b16 %v387
        %v612 = vunpack.c.l.b16 %v388
        %v613 = vunpack.c.l.b16 %v389
        %v614 = vunpack.c.l.b16 %v390
        %v615 = vunpack.c.l.b16 %v391
        %v616 = vunpack.c.l.b16 %v392
        %v617 = vunpack.c.l.b16 %v393
        %v618 = vunpack.c.l.b16 %v394
        %v619 = vunpack.c.l.b16 %v395
        %v620 = vunpack.c.l.b16 %v396
        %v621 = vunpack.c.l.b16 %v397
        %v622 = vunpack.c.l.b16 %v398
        %v623 = vpack.c.b16 %v592, %v591
        %v624 = vpack.c.b16 %v594, %v593
        %v625 = vpack.c.b16 %v596, %v595
        %v626 = vpack.c.b16 %v598, %v597
        %v627 = vpack.c.b16 %v600, %v599
        %v628 = vpack.c.b16 %v602, %v601
        %v629 = vpack.c.b16 %v604, %v603
        %v630 = vpack.c.b16 %v606, %v605
        %v631 = vpack.c.b16 %v608, %v607
        %v632 = vpack.c.b16 %v610, %v609
        %v633 = vpack.c.b16 %v612, %v611
        %v634 = vpack.c.b16 %v614, %v613
        %v635 = vpack.c.b16 %v616, %v615
        %v636 = vpack.c.b16 %v618, %v617
        %v637 = vpack.c.b16 %v620, %v619
        %v638 = vpack.c.b16 %v622, %v621
        %655 = vmatprep.subr.bf16.mxu0 0
        %656 = vmatpush1.bf16.msra.mxu0 %v623
        %657 = vmatprep.subr.bf16.mxu0 0
        %658 = vmatpush1.bf16.msra.mxu0 %v624
        %659 = vmatprep.subr.bf16.mxu0 0
        %660 = vmatpush1.bf16.msra.mxu0 %v625
        %661 = vmatprep.subr.bf16.mxu0 0
        %662 = vmatpush1.bf16.msra.mxu0 %v626
        %663 = vmatprep.subr.bf16.mxu0 0
        %664 = vmatpush1.bf16.msra.mxu0 %v627
        %665 = vmatprep.subr.bf16.mxu0 0
        %666 = vmatpush1.bf16.msra.mxu0 %v628
        %667 = vmatprep.subr.bf16.mxu0 0
        %668 = vmatpush1.bf16.msra.mxu0 %v629
        %669 = vmatprep.subr.bf16.mxu0 0
        %670 = vmatpush1.bf16.msra.mxu0 %v630
        %671 = vmatprep.subr.bf16.mxu0 0
        %672 = vmatpush1.bf16.msra.mxu0 %v631
        %673 = vmatprep.subr.bf16.mxu0 0
        %674 = vmatpush1.bf16.msra.mxu0 %v632
        %675 = vmatprep.subr.bf16.mxu0 0
        %676 = vmatpush1.bf16.msra.mxu0 %v633
        %677 = vmatprep.subr.bf16.mxu0 0
        %678 = vmatpush1.bf16.msra.mxu0 %v634
        %679 = vmatprep.subr.bf16.mxu0 0
        %680 = vmatpush1.bf16.msra.mxu0 %v635
        %681 = vmatprep.subr.bf16.mxu0 0
        %682 = vmatpush1.bf16.msra.mxu0 %v636
        %683 = vmatprep.subr.bf16.mxu0 0
        %684 = vmatpush1.bf16.msra.mxu0 %v637
        %685 = vmatprep.subr.bf16.mxu0 0
        %686 = vmatpush1.bf16.msra.mxu0 %v638
        %687 = vmatprep.mubr.bf16.mxu0 %v496
        %688 = vmatmul.mubr.bf16.gmra.mrb[0].mxu0 %v495
        %v689 = vpop.f32.mrb[0].mxu0
        %v690 = vadd.f32 0.0, %v689
        %v691 = vpop.f32.mrb[0].mxu0
        %v692 = vpop.f32.mrb[0].mxu0
        %v693 = vadd.f32 0.0, %v692
        %v694 = vpop.f32.mrb[0].mxu0
        %695 = vmatprep.mubr.bf16.mxu0 %v498
        %696 = vmatmul.mubr.bf16.gmra.mrb[0].mxu0 %v497
        %v697 = vpop.f32.mrb[0].mxu0
        %v698 = vadd.f32 0.0, %v697
        %v699 = vpop.f32.mrb[0].mxu0
        %v700 = vpop.f32.mrb[0].mxu0
        %v701 = vadd.f32 0.0, %v700
        %v702 = vpop.f32.mrb[0].mxu0
        %703 = vmatprep.mubr.bf16.mxu0 %v500
        %704 = vmatmul.mubr.bf16.gmra.mrb[0].mxu0 %v499
        %v705 = vpop.f32.mrb[0].mxu0
        %v706 = vadd.f32 0.0, %v705
        %v707 = vpop.f32.mrb[0].mxu0
        %v708 = vpop.f32.mrb[0].mxu0
        %v709 = vadd.f32 0.0, %v708
        %v710 = vpop.f32.mrb[0].mxu0
        %711 = vmatprep.mubr.bf16.mxu0 %v502
        %712 = vmatmul.mubr.bf16.gmra.mrb[0].mxu0 %v501
        %v713 = vpop.f32.mrb[0].mxu0
        %v714 = vadd.f32 0.0, %v713
        %v715 = vpop.f32.mrb[0].mxu0
        %v716 = vpop.f32.mrb[0].mxu0
        %v717 = vadd.f32 0.0, %v716
        %v718 = vpop.f32.mrb[0].mxu0
        %719 = vmatprep.mubr.bf16.mxu0 %v504
        %720 = vmatmul.mubr.bf16.gmra.mrb[0].mxu0 %v503
        %v721 = vpop.f32.mrb[0].mxu0
        %v722 = vadd.f32 0.0, %v721
        %v723 = vpop.f32.mrb[0].mxu0
        %v724 = vpop.f32.mrb[0].mxu0
        %v725 = vadd.f32 0.0, %v724
        %v726 = vpop.f32.mrb[0].mxu0
        %727 = vmatprep.mubr.bf16.mxu0 %v506
        %728 = vmatmul.mubr.bf16.gmra.mrb[0].mxu0 %v505
        %v729 = vpop.f32.mrb[0].mxu0
        %v730 = vadd.f32 0.0, %v729
        %v731 = vpop.f32.mrb[0].mxu0
        %v732 = vpop.f32.mrb[0].mxu0
        %v733 = vadd.f32 0.0, %v732
        %v734 = vpop.f32.mrb[0].mxu0
        %735 = vmatprep.mubr.bf16.mxu0 %v508
        %736 = vmatmul.mubr.bf16.gmra.mrb[0].mxu0 %v507
        %v737 = vpop.f32.mrb[0].mxu0
        %v738 = vadd.f32 0.0, %v737
        %v739 = vpop.f32.mrb[0].mxu0
        %v740 = vpop.f32.mrb[0].mxu0
        %v741 = vadd.f32 0.0, %v740
        %v742 = vpop.f32.mrb[0].mxu0
        %743 = vmatprep.mubr.bf16.mxu0 %v510
        %744 = vmatmul.mubr.bf16.gmra.mrb[0].mxu0 %v509
        %v745 = vpop.f32.mrb[0].mxu0
        %v746 = vadd.f32 0.0, %v745
        %v747 = vpop.f32.mrb[0].mxu0
        %v748 = vpop.f32.mrb[0].mxu0
        %v749 = vadd.f32 0.0, %v748
        %v750 = vpop.f32.mrb[0].mxu0
        %751 = vmatprep.mubr.bf16.mxu0 %v512
        %752 = vmatmul.mubr.bf16.gmra.mrb[0].mxu0 %v511
        %v753 = vpop.f32.mrb[0].mxu0
        %v754 = vadd.f32 0.0, %v753
        %v755 = vpop.f32.mrb[0].mxu0
        %v756 = vpop.f32.mrb[0].mxu0
        %v757 = vadd.f32 0.0, %v756
        %v758 = vpop.f32.mrb[0].mxu0
        %759 = vmatprep.mubr.bf16.mxu0 %v514
        %760 = vmatmul.mubr.bf16.gmra.mrb[0].mxu0 %v513
        %v761 = vpop.f32.mrb[0].mxu0
        %v762 = vadd.f32 0.0, %v761
        %v763 = vpop.f32.mrb[0].mxu0
        %v764 = vpop.f32.mrb[0].mxu0
        %v765 = vadd.f32 0.0, %v764
        %v766 = vpop.f32.mrb[0].mxu0
        %767 = vmatprep.mubr.bf16.mxu0 %v516
        %768 = vmatmul.mubr.bf16.gmra.mrb[0].mxu0 %v515
        %v769 = vpop.f32.mrb[0].mxu0
        %v770 = vadd.f32 0.0, %v769
        %v771 = vpop.f32.mrb[0].mxu0
        %v772 = vpop.f32.mrb[0].mxu0
        %v773 = vadd.f32 0.0, %v772
        %v774 = vpop.f32.mrb[0].mxu0
        %775 = vmatprep.mubr.bf16.mxu0 %v518
        %776 = vmatmul.mubr.bf16.gmra.mrb[0].mxu0 %v517
        %v777 = vpop.f32.mrb[0].mxu0
        %v778 = vadd.f32 0.0, %v777
        %v779 = vpop.f32.mrb[0].mxu0
        %v780 = vpop.f32.mrb[0].mxu0
        %v781 = vadd.f32 0.0, %v780
        %v782 = vpop.f32.mrb[0].mxu0
        %783 = vmatprep.mubr.bf16.mxu0 %v520
        %784 = vmatmul.mubr.bf16.gmra.mrb[0].mxu0 %v519
        %v785 = vpop.f32.mrb[0].mxu0
        %v786 = vadd.f32 0.0, %v785
        %v787 = vpop.f32.mrb[0].mxu0
        %v788 = vpop.f32.mrb[0].mxu0
        %v789 = vadd.f32 0.0, %v788
        %v790 = vpop.f32.mrb[0].mxu0
        %791 = vmatprep.mubr.bf16.mxu0 %v522
        %792 = vmatmul.mubr.bf16.gmra.mrb[0].mxu0 %v521
        %v793 = vpop.f32.mrb[0].mxu0
        %v794 = vadd.f32 0.0, %v793
        %v795 = vpop.f32.mrb[0].mxu0
        %v796 = vpop.f32.mrb[0].mxu0
        %v797 = vadd.f32 0.0, %v796
        %v798 = vpop.f32.mrb[0].mxu0
        %799 = vmatprep.mubr.bf16.mxu0 %v524
        %800 = vmatmul.mubr.bf16.gmra.mrb[0].mxu0 %v523
        %v801 = vpop.f32.mrb[0].mxu0
        %v802 = vadd.f32 0.0, %v801
        %v803 = vpop.f32.mrb[0].mxu0
        %v804 = vpop.f32.mrb[0].mxu0
        %v805 = vadd.f32 0.0, %v804
        %v806 = vpop.f32.mrb[0].mxu0
        %807 = vmatprep.mubr.bf16.mxu0 %v526
        %808 = vmatmul.mubr.bf16.gmra.mrb[0].mxu0 %v525
        %v809 = vpop.f32.mrb[0].mxu0
        %v810 = vadd.f32 0.0, %v809
        %v811 = vpop.f32.mrb[0].mxu0
        %v812 = vpop.f32.mrb[0].mxu0
        %v813 = vadd.f32 0.0, %v812
        %v814 = vpop.f32.mrb[0].mxu0
        %815 = vdwg.mxu0
        %v816 = vadd.f32 %v303, %v690
        %v817 = vadd.f32 %v304, %v693
        %v818 = vadd.f32 %v305, %v698
        %v819 = vadd.f32 %v306, %v701
        %v820 = vadd.f32 %v307, %v706
        %v821 = vadd.f32 %v308, %v709
        %v822 = vadd.f32 %v309, %v714
        %v823 = vadd.f32 %v310, %v717
        %v824 = vadd.f32 %v311, %v722
        %v825 = vadd.f32 %v312, %v725
        %v826 = vadd.f32 %v313, %v730
        %v827 = vadd.f32 %v314, %v733
        %v828 = vadd.f32 %v315, %v738
        %v829 = vadd.f32 %v316, %v741
        %v830 = vadd.f32 %v317, %v746
        %v831 = vadd.f32 %v318, %v749
        %v832 = vadd.f32 %v319, %v754
        %v833 = vadd.f32 %v320, %v757
        %v834 = vadd.f32 %v321, %v762
        %v835 = vadd.f32 %v322, %v765
        %v836 = vadd.f32 %v323, %v770
        %v837 = vadd.f32 %v324, %v773
        %v838 = vadd.f32 %v325, %v778
        %v839 = vadd.f32 %v326, %v781
        %v840 = vadd.f32 %v327, %v786
        %v841 = vadd.f32 %v328, %v789
        %v842 = vadd.f32 %v329, %v794
        %v843 = vadd.f32 %v330, %v797
        %v844 = vadd.f32 %v331, %v802
        %v845 = vadd.f32 %v332, %v805
        %v846 = vadd.f32 %v333, %v810
        %v847 = vadd.f32 %v334, %v813
        %848 = vst [vmem:[#allocation2] sm:$0xff] %v816
        %849 = vst [vmem:[#allocation2 + $0x8] sm:$0xff] %v817
        %850 = vst [vmem:[#allocation2 + $0x10] sm:$0xff] %v818
        %851 = vst [vmem:[#allocation2 + $0x18] sm:$0xff] %v819
        %852 = vst [vmem:[#allocation2 + $0x20] sm:$0xff] %v820
        %853 = vst [vmem:[#allocation2 + $0x28] sm:$0xff] %v821
        %854 = vst [vmem:[#allocation2 + $0x30] sm:$0xff] %v822
        %855 = vst [vmem:[#allocation2 + $0x38] sm:$0xff] %v823
        %856 = vst [vmem:[#allocation2 + $0x40] sm:$0xff] %v824
        %857 = vst [vmem:[#allocation2 + $0x48] sm:$0xff] %v825
        %858 = vst [vmem:[#allocation2 + $0x50] sm:$0xff] %v826
        %859 = vst [vmem:[#allocation2 + $0x58] sm:$0xff] %v827
        %860 = vst [vmem:[#allocation2 + $0x60] sm:$0xff] %v828
        %861 = vst [vmem:[#allocation2 + $0x68] sm:$0xff] %v829
        %862 = vst [vmem:[#allocation2 + $0x70] sm:$0xff] %v830
        %863 = vst [vmem:[#allocation2 + $0x78] sm:$0xff] %v831
        %864 = vst [vmem:[#allocation2 + $0x80] sm:$0xff] %v832
        %865 = vst [vmem:[#allocation2 + $0x88] sm:$0xff] %v833
        %866 = vst [vmem:[#allocation2 + $0x90] sm:$0xff] %v834
        %867 = vst [vmem:[#allocation2 + $0x98] sm:$0xff] %v835
        %868 = vst [vmem:[#allocation2 + $0xa0] sm:$0xff] %v836
        %869 = vst [vmem:[#allocation2 + $0xa8] sm:$0xff] %v837
        %870 = vst [vmem:[#allocation2 + $0xb0] sm:$0xff] %v838
        %871 = vst [vmem:[#allocation2 + $0xb8] sm:$0xff] %v839
        %872 = vst [vmem:[#allocation2 + $0xc0] sm:$0xff] %v840
        %873 = vst [vmem:[#allocation2 + $0xc8] sm:$0xff] %v841
        %874 = vst [vmem:[#allocation2 + $0xd0] sm:$0xff] %v842
        %875 = vst [vmem:[#allocation2 + $0xd8] sm:$0xff] %v843
        %876 = vst [vmem:[#allocation2 + $0xe0] sm:$0xff] %v844
        %877 = vst [vmem:[#allocation2 + $0xe8] sm:$0xff] %v845
        %878 = vst [vmem:[#allocation2 + $0xf0] sm:$0xff] %v846
        %879 = vst [vmem:[#allocation2 + $0xf8] sm:$0xff] %v847
        // Predicated region
        $region45: #{tpu_custom_call.1} parent=31 // pred_check
          %p880 = pneg %p260
        $region46: #{tpu_custom_call.1} parent=31 // pred_check_branch
          %882 = sbr.rel (%p880) target = $region48
        $region47: #{tpu_custom_call.1} parent=31 // pred_region
          %v883 = vld [vmem:[#allocation2] sm:$0xff]
          %v884 = vld [vmem:[#allocation2 + $0x8] sm:$0xff]
          %v885 = vld [vmem:[#allocation2 + $0x10] sm:$0xff]
          %v886 = vld [vmem:[#allocation2 + $0x18] sm:$0xff]
          %v887 = vld [vmem:[#allocation2 + $0x20] sm:$0xff]
          %v888 = vld [vmem:[#allocation2 + $0x28] sm:$0xff]
          %v889 = vld [vmem:[#allocation2 + $0x30] sm:$0xff]
          %v890 = vld [vmem:[#allocation2 + $0x38] sm:$0xff]
          %v891 = vld [vmem:[#allocation2 + $0x40] sm:$0xff]
          %v892 = vld [vmem:[#allocation2 + $0x48] sm:$0xff]
          %v893 = vld [vmem:[#allocation2 + $0x50] sm:$0xff]
          %v894 = vld [vmem:[#allocation2 + $0x58] sm:$0xff]
          %v895 = vld [vmem:[#allocation2 + $0x60] sm:$0xff]
          %v896 = vld [vmem:[#allocation2 + $0x68] sm:$0xff]
          %v897 = vld [vmem:[#allocation2 + $0x70] sm:$0xff]
          %v898 = vld [vmem:[#allocation2 + $0x78] sm:$0xff]
          %v899 = vld [vmem:[#allocation2 + $0x80] sm:$0xff]
          %v900 = vld [vmem:[#allocation2 + $0x88] sm:$0xff]
          %v901 = vld [vmem:[#allocation2 + $0x90] sm:$0xff]
          %v902 = vld [vmem:[#allocation2 + $0x98] sm:$0xff]
          %v903 = vld [vmem:[#allocation2 + $0xa0] sm:$0xff]
          %v904 = vld [vmem:[#allocation2 + $0xa8] sm:$0xff]
          %v905 = vld [vmem:[#allocation2 + $0xb0] sm:$0xff]
          %v906 = vld [vmem:[#allocation2 + $0xb8] sm:$0xff]
          %v907 = vld [vmem:[#allocation2 + $0xc0] sm:$0xff]
          %v908 = vld [vmem:[#allocation2 + $0xc8] sm:$0xff]
          %v909 = vld [vmem:[#allocation2 + $0xd0] sm:$0xff]
          %v910 = vld [vmem:[#allocation2 + $0xd8] sm:$0xff]
          %v911 = vld [vmem:[#allocation2 + $0xe0] sm:$0xff]
          %v912 = vld [vmem:[#allocation2 + $0xe8] sm:$0xff]
          %v913 = vld [vmem:[#allocation2 + $0xf0] sm:$0xff]
          %v914 = vld [vmem:[#allocation2 + $0xf8] sm:$0xff]
          %v915 = vmax.f32 %v883, 0.0
          %v916 = vmax.f32 %v884, 0.0
          %v917 = vmax.f32 %v885, 0.0
          %v918 = vmax.f32 %v886, 0.0
          %v919 = vmax.f32 %v887, 0.0
          %v920 = vmax.f32 %v888, 0.0
          %v921 = vmax.f32 %v889, 0.0
          %v922 = vmax.f32 %v890, 0.0
          %v923 = vmax.f32 %v891, 0.0
          %v924 = vmax.f32 %v892, 0.0
          %v925 = vmax.f32 %v893, 0.0
          %v926 = vmax.f32 %v894, 0.0
          %v927 = vmax.f32 %v895, 0.0
          %v928 = vmax.f32 %v896, 0.0
          %v929 = vmax.f32 %v897, 0.0
          %v930 = vmax.f32 %v898, 0.0
          %v931 = vmax.f32 %v899, 0.0
          %v932 = vmax.f32 %v900, 0.0
          %v933 = vmax.f32 %v901, 0.0
          %v934 = vmax.f32 %v902, 0.0
          %v935 = vmax.f32 %v903, 0.0
          %v936 = vmax.f32 %v904, 0.0
          %v937 = vmax.f32 %v905, 0.0
          %v938 = vmax.f32 %v906, 0.0
          %v939 = vmax.f32 %v907, 0.0
          %v940 = vmax.f32 %v908, 0.0
          %v941 = vmax.f32 %v909, 0.0
          %v942 = vmax.f32 %v910, 0.0
          %v943 = vmax.f32 %v911, 0.0
          %v944 = vmax.f32 %v912, 0.0
          %v945 = vmax.f32 %v913, 0.0
          %v946 = vmax.f32 %v914, 0.0
          %v947 = vpack.c.bf16 %v916, %v915
          %v948 = vpack.c.bf16 %v918, %v917
          %v949 = vpack.c.bf16 %v920, %v919
          %v950 = vpack.c.bf16 %v922, %v921
          %v951 = vpack.c.bf16 %v924, %v923
          %v952 = vpack.c.bf16 %v926, %v925
          %v953 = vpack.c.bf16 %v928, %v927
          %v954 = vpack.c.bf16 %v930, %v929
          %v955 = vpack.c.bf16 %v932, %v931
          %v956 = vpack.c.bf16 %v934, %v933
          %v957 = vpack.c.bf16 %v936, %v935
          %v958 = vpack.c.bf16 %v938, %v937
          %v959 = vpack.c.bf16 %v940, %v939
          %v960 = vpack.c.bf16 %v942, %v941
          %v961 = vpack.c.bf16 %v944, %v943
          %v962 = vpack.c.bf16 %v946, %v945
          %v979 = vunpack.c.l.b16 %v947
          %v980 = vunpack.c.h.b16 %v947
          %v981 = vunpack.c.l.b16 %v948
          %v982 = vunpack.c.h.b16 %v948
          %v983 = vunpack.c.l.b16 %v949
          %v984 = vunpack.c.h.b16 %v949
          %v985 = vunpack.c.l.b16 %v950
          %v986 = vunpack.c.h.b16 %v950
          %v987 = vunpack.c.l.b16 %v951
          %v988 = vunpack.c.h.b16 %v951
          %v989 = vunpack.c.l.b16 %v952
          %v990 = vunpack.c.h.b16 %v952
          %v991 = vunpack.c.l.b16 %v953
          %v992 = vunpack.c.h.b16 %v953
          %v993 = vunpack.c.l.b16 %v954
          %v994 = vunpack.c.h.b16 %v954
          %v995 = vunpack.c.l.b16 %v955
          %v996 = vunpack.c.h.b16 %v955
          %v997 = vunpack.c.l.b16 %v956
          %v998 = vunpack.c.h.b16 %v956
          %v999 = vunpack.c.l.b16 %v957
          %v1000 = vunpack.c.h.b16 %v957
          %v1001 = vunpack.c.l.b16 %v958
          %v1002 = vunpack.c.h.b16 %v958
          %v1003 = vunpack.c.l.b16 %v959
          %v1004 = vunpack.c.h.b16 %v959
          %v1005 = vunpack.c.l.b16 %v960
          %v1006 = vunpack.c.h.b16 %v960
          %v1007 = vunpack.c.l.b16 %v961
          %v1008 = vunpack.c.h.b16 %v961
          %v1009 = vunpack.c.l.b16 %v962
          %v1010 = vunpack.c.h.b16 %v962
          %v1011 = vpack.c.b16 %v979, %v979
          %v1012 = vpack.c.b16 %v980, %v980
          %v1013 = vpack.c.b16 %v981, %v981
          %v1014 = vpack.c.b16 %v982, %v982
          %v1015 = vpack.c.b16 %v983, %v983
          %v1016 = vpack.c.b16 %v984, %v984
          %v1017 = vpack.c.b16 %v985, %v985
          %v1018 = vpack.c.b16 %v986, %v986
          %v1019 = vpack.c.b16 %v987, %v987
          %v1020 = vpack.c.b16 %v988, %v988
          %v1021 = vpack.c.b16 %v989, %v989
          %v1022 = vpack.c.b16 %v990, %v990
          %v1023 = vpack.c.b16 %v991, %v991
          %v1024 = vpack.c.b16 %v992, %v992
          %v1025 = vpack.c.b16 %v993, %v993
          %v1026 = vpack.c.b16 %v994, %v994
          %v1027 = vpack.c.b16 %v995, %v995
          %v1028 = vpack.c.b16 %v996, %v996
          %v1029 = vpack.c.b16 %v997, %v997
          %v1030 = vpack.c.b16 %v998, %v998
          %v1031 = vpack.c.b16 %v999, %v999
          %v1032 = vpack.c.b16 %v1000, %v1000
          %v1033 = vpack.c.b16 %v1001, %v1001
          %v1034 = vpack.c.b16 %v1002, %v1002
          %v1035 = vpack.c.b16 %v1003, %v1003
          %v1036 = vpack.c.b16 %v1004, %v1004
          %v1037 = vpack.c.b16 %v1005, %v1005
          %v1038 = vpack.c.b16 %v1006, %v1006
          %v1039 = vpack.c.b16 %v1007, %v1007
          %v1040 = vpack.c.b16 %v1008, %v1008
          %v1041 = vpack.c.b16 %v1009, %v1009
          %v1042 = vpack.c.b16 %v1010, %v1010
          %1075 = vst [vmem:[%s251] sm:$0xf] %v1011
          %1076 = vst [vmem:[%s251 + $0x4] sm:$0xf] %v1012
          %1077 = vst [vmem:[%s251 + $0x8] sm:$0xf] %v1013
          %1078 = vst [vmem:[%s251 + $0xc] sm:$0xf] %v1014
          %1079 = vst [vmem:[%s251 + $0x10] sm:$0xf] %v1015
          %1080 = vst [vmem:[%s251 + $0x14] sm:$0xf] %v1016
          %1081 = vst [vmem:[%s251 + $0x18] sm:$0xf] %v1017
          %1082 = vst [vmem:[%s251 + $0x1c] sm:$0xf] %v1018
          %1083 = vst [vmem:[%s251 + $0x20] sm:$0xf] %v1019
          %1084 = vst [vmem:[%s251 + $0x24] sm:$0xf] %v1020
          %1085 = vst [vmem:[%s251 + $0x28] sm:$0xf] %v1021
          %1086 = vst [vmem:[%s251 + $0x2c] sm:$0xf] %v1022
          %1087 = vst [vmem:[%s251 + $0x30] sm:$0xf] %v1023
          %1088 = vst [vmem:[%s251 + $0x34] sm:$0xf] %v1024
          %1089 = vst [vmem:[%s251 + $0x38] sm:$0xf] %v1025
          %1090 = vst [vmem:[%s251 + $0x3c] sm:$0xf] %v1026
          %1091 = vst [vmem:[%s251 + $0x40] sm:$0xf] %v1027
          %1092 = vst [vmem:[%s251 + $0x44] sm:$0xf] %v1028
          %1093 = vst [vmem:[%s251 + $0x48] sm:$0xf] %v1029
          %1094 = vst [vmem:[%s251 + $0x4c] sm:$0xf] %v1030
          %1095 = vst [vmem:[%s251 + $0x50] sm:$0xf] %v1031
          %1096 = vst [vmem:[%s251 + $0x54] sm:$0xf] %v1032
          %1097 = vst [vmem:[%s251 + $0x58] sm:$0xf] %v1033
          %1098 = vst [vmem:[%s251 + $0x5c] sm:$0xf] %v1034
          %1099 = vst [vmem:[%s251 + $0x60] sm:$0xf] %v1035
          %1100 = vst [vmem:[%s251 + $0x64] sm:$0xf] %v1036
          %1101 = vst [vmem:[%s251 + $0x68] sm:$0xf] %v1037
          %1102 = vst [vmem:[%s251 + $0x6c] sm:$0xf] %v1038
          %1103 = vst [vmem:[%s251 + $0x70] sm:$0xf] %v1039
          %1104 = vst [vmem:[%s251 + $0x74] sm:$0xf] %v1040
          %1105 = vst [vmem:[%s251 + $0x78] sm:$0xf] %v1041
          %1106 = vst [vmem:[%s251 + $0x7c] sm:$0xf] %v1042
        $region48: #{tpu_custom_call.1} parent=31 // pred_fallthru
          _
        %s1107 = sand.u32 %s132, 1
        %s1108 = scalar_lea.sflag [#allocation5], %s1107
        %s1109 = sand.u32 %s132, 1
        %s1110 = smul.addr %s1109, 128
        %s1111 = scalar_lea.vmem [#allocation8], %s1110
        // Predicated region
        $region49: #{tpu_custom_call.1} parent=31 // pred_check
          %p1112 = pneg %p142
        $region50: #{tpu_custom_call.1} parent=31 // pred_check_branch
          %1114 = sbr.rel (%p1112) target = $region52
        $region51: #{tpu_custom_call.1} parent=31 // pred_region
          %s1115 = smul.u32 32, %s26
          %s1117 = ssub.s32 2048, 2048
          %1118 = vsyncadd %s1108, %s1117
          %s1119 = sadd.s32 %s27, %s1115
          %s1120 = smul.addr %s1119, 64
          %s1121 = scalar_lea.hbm %s3, %s1120
          %s1122 = sshll.u32 %s1111, 4
          %s1123 = int_to_ptr.vmem [resolvable:$true] %s1122
          %1128 = dma.vmem_to_hbm [thread:$0]  %s1123, 2048, %s1121, %s1108, 64, 64, 4
        $region52: #{tpu_custom_call.1} parent=31 // pred_fallthru
          _
      $region32: #{tpu_custom_call.1} parent=5 // pred_fallthru
        _
      %p1129 = scmp.le.s32.totalorder 2, %s16
      // Predicated region
      $region53: #{tpu_custom_call.1} parent=5 // pred_check
        %p1130 = pneg %p1129
      $region54: #{tpu_custom_call.1} parent=5 // pred_check_branch
        %1132 = sbr.rel (%p1130) target = $region56
      $region55: #{tpu_custom_call.1} parent=5 // pred_region
        %s1133 = ssub.s32 %s16, 2
        // Predicated region
        $region57: #{tpu_custom_call.1} parent=55 // pred_check
          %p1134 = pneg %p148
        $region58: #{tpu_custom_call.1} parent=55 // pred_check_branch
          %1136 = sbr.rel (%p1134) target = $region60
        $region59: #{tpu_custom_call.1} parent=55 // pred_region
          %s1137 = sand.u32 %s133, 1
          %s1138 = scalar_lea.sflag [#allocation5], %s1137
          %s1139 = sand.u32 %s133, 1
          %s1140 = smul.addr %s1139, 128
          %s1141 = scalar_lea.vmem [#allocation8], %s1140
          %1142 = dma.done %s1138, 2048
        $region60: #{tpu_custom_call.1} parent=55 // pred_fallthru
          _
      $region56: #{tpu_custom_call.1} parent=5 // pred_fallthru
        _
    $region6: #{tpu_custom_call.1} parent=1 // loop_footer
      %s20 = sadd.s32 1, %s16
    $region7: #{tpu_custom_call.1} parent=1 // loop_footer_branch
      %15 = sbr.rel target = $region3
    $region8: #{tpu_custom_call.1} parent=1 // loop_exit
      _
    %1143 = vsyncpa [#allocation4], 1
    %s1144 = scalar_lea.sflag [#allocation4], 1
    %1145 = vsyncpa %s1144, 1
    %1146 = vsyncpa [#allocation7], 1
    %1147 = vsyncpa [#allocation5], 1
    %s1148 = scalar_lea.sflag [#allocation5], 1
    %1149 = vsyncpa %s1148, 1

</llo_original>
